<compile_context>
chip_gen: v6e
topology: v6e:2x2x1
jax: 0.10.0
libtpu: 0.0.40
codegen_flags: <defaults>
</compile_context>

<pallas_src>
import jax
import jax.numpy as jnp
import numpy as np
from jax.experimental import pallas as pl
from jax.experimental.pallas import tpu as pltpu

NUM_ELMO_LAYERS = 3


def _round_up(x, m):
    return ((x + m - 1) // m) * m


def wordrep_kernel(we_ref, elmo_ref, w_ref, b_ref, out_ref):
    # we_ref:   (B, ts, D)  f32   gathered word-embedding tile (batch-major)
    # elmo_ref: (L, ts, E)  bf16  elmo layer stack tile
    # w_ref:    (E, D)      bf16  elmo projection weight, pre-transposed, /L folded in
    # b_ref:    (1, D)      f32   elmo projection bias
    # out_ref:  (B, ts, D)  f32
    elmo_sum = elmo_ref[0] + elmo_ref[1] + elmo_ref[2]               # (ts, E) bf16
    proj = jnp.dot(elmo_sum, w_ref[...],
                   preferred_element_type=jnp.float32) + b_ref[...]  # (ts, D) f32
    out_ref[...] = we_ref[...] + proj[None, :, :]                    # bcast over B


def prepare_wordrep_params(word_embed_table, w_proj, b_proj,
                           num_elmo_layers=NUM_ELMO_LAYERS):
    """One-time parameter prep (do this OUTSIDE the per-step jitted forward)."""
    D, E = w_proj.shape
    # Pre-transpose, fold the 1/L of the layer mean into the weight, cast bf16.
    w_t = (w_proj.T * (1.0 / num_elmo_layers)).astype(jnp.bfloat16)  # (E, D)
    b2 = b_proj.reshape(1, D).astype(jnp.float32)                    # (1, D)
    return {
        "word_embed_table": word_embed_table.astype(jnp.float32),
        "w_t": w_t,
        "b2": b2,
    }


def wordrep_forward(sentence, elmo_tensor, params, *, seq_tile=None):
    """Forward pass of WordRep (use_elmo, mean-of-layers, projected, add).

    sentence:     (S, B) int32 (seq-first, as torchtext)
    elmo_tensor:  (L=3, S, 1024) float32 or bfloat16
    returns:      (S, B, D) float32
    """
    table = params["word_embed_table"]
    w_t = params["w_t"]
    b2 = params["b2"]

    S, B = sentence.shape
    V, D = table.shape
    L, S2, E = elmo_tensor.shape
    assert S == S2 and L == NUM_ELMO_LAYERS and w_t.shape == (E, D)

    # --- glue: embedding gather, directly in batch-major (B, S, D) layout ----
    we_bsd = jnp.take(table, sentence.T, axis=0).astype(jnp.float32)  # (B, S, D)
    # Dominant HBM stream -> bf16 (ideally the producer already emits bf16).
    elmo_b = elmo_tensor.astype(jnp.bfloat16)                         # (L, S, E)

    # --- sequence tiling with padding for ragged S ---------------------------
    target = 256 if seq_tile is None else seq_tile
    ts = min(_round_up(target, 8), _round_up(S, 8))
    S_pad = _round_up(S, ts)
    if S_pad != S:
        we_bsd = jnp.pad(we_bsd, ((0, 0), (0, S_pad - S), (0, 0)))
        elmo_b = jnp.pad(elmo_b, ((0, 0), (0, S_pad - S), (0, 0)))

    out_bsd = pl.pallas_call(
        wordrep_kernel,
        out_shape=jax.ShapeDtypeStruct((B, S_pad, D), jnp.float32),
        grid_spec=pltpu.PrefetchScalarGridSpec(
            num_scalar_prefetch=0,
            grid=(S_pad // ts,),
            in_specs=[
                pl.BlockSpec((B, ts, D), lambda i: (0, i, 0)),   # words_embeds
                pl.BlockSpec((L, ts, E), lambda i: (0, i, 0)),   # elmo stack (bf16)
                pl.BlockSpec((E, D), lambda i: (0, 0)),          # proj weight (bf16)
                pl.BlockSpec((1, D), lambda i: (0, 0)),          # proj bias (f32)
            ],
            out_specs=pl.BlockSpec((B, ts, D), lambda i: (0, i, 0)),
        ),
        compiler_params=pltpu.CompilerParams(
            dimension_semantics=("parallel",)),
    )(we_bsd, elmo_b, w_t, b2)

    # Back to the PyTorch (S, B, D) layout, dropping seq padding.
    return jnp.transpose(out_bsd[:, :S, :], (1, 0, 2))


if __name__ == "__main__":
    key = jax.random.PRNGKey(0)
    k1, k2, k3, k4, k5 = jax.random.split(key, 5)

    vocab_size, word_embed_dim = 50, 32
    seq_len, batch = 8, 2
    elmo_layers, elmo_dim = NUM_ELMO_LAYERS, 1024

    # Deterministic synthetic parameters (shapes from WordRep.__init__).
    word_embed_table = 0.1 * jax.random.normal(
        k1, (vocab_size, word_embed_dim), jnp.float32)          # nn.Embedding(V, D)
    w_proj = 0.02 * jax.random.normal(
        k2, (word_embed_dim, elmo_dim), jnp.float32)            # elmo_proj.weight (D, 1024)
    b_proj = 0.01 * jax.random.normal(
        k3, (word_embed_dim,), jnp.float32)                     # elmo_proj.bias (D,)

    # Inputs.
    sentence = jax.random.randint(k4, (seq_len, batch), 0, vocab_size, jnp.int32)
    elmo_tensor = jax.random.normal(
        k5, (elmo_layers, seq_len, elmo_dim), jnp.float32)

    params = prepare_wordrep_params(word_embed_table, w_proj, b_proj)
    out = wordrep_forward(sentence, elmo_tensor, params)
    out = jax.block_until_ready(out)
    assert out.shape == (seq_len, batch, word_embed_dim)

    # Reference 1: same arithmetic as the kernel (bf16 elmo/weight, f32 accum).
    we_g = jnp.take(word_embed_table, sentence, axis=0)                    # (S, B, D)
    elmo_b = elmo_tensor.astype(jnp.bfloat16)
    w_t = (w_proj.T * (1.0 / elmo_layers)).astype(jnp.bfloat16)
    elmo_sum = elmo_b[0] + elmo_b[1] + elmo_b[2]
    proj_b = jnp.dot(elmo_sum, w_t, preferred_element_type=jnp.float32) + b_proj
    ref_bf16 = we_g + proj_b[:, None, :]
    np.testing.assert_allclose(np.asarray(out), np.asarray(ref_bf16),
                               rtol=1e-3, atol=1e-3)

    # Reference 2: original full-f32 PyTorch semantics (loose tolerance for bf16).
    proj_f = jnp.mean(elmo_tensor, axis=0) @ w_proj.T + b_proj
    ref_f32 = we_g + proj_f[:, None, :]
    np.testing.assert_allclose(np.asarray(out), np.asarray(ref_f32),
                               rtol=3e-2, atol=3e-2)

    print("KERNEL_OK")
</pallas_src>

<mosaic_0001>
module attributes {stable_mosaic.version = 11 : i64} {
  func.func @wordrep_kernel(%arg0: i32, %arg1: memref<2x8x32xf32, #tpu.memory_space<vmem>>, %arg2: memref<3x8x1024xbf16, #tpu.memory_space<vmem>>, %arg3: memref<1024x32xbf16, #tpu.memory_space<vmem>>, %arg4: memref<1x32xf32, #tpu.memory_space<vmem>>, %arg5: memref<2x8x32xf32, #tpu.memory_space<vmem>>) attributes {dimension_semantics = [#tpu.dimension_semantics<parallel>], iteration_bounds = array<i64: 1>, scalar_prefetch = 0 : i64, scratch_operands = 0 : i64, tpu.core_type = #tpu.core_type<tc>, window_params = [{transform_indices = @transform_0, window_bounds = array<i64: 2, 8, 32>}, {transform_indices = @transform_1, window_bounds = array<i64: 3, 8, 1024>}, {pipeline_mode = #tpu.pipeline_mode<synchronous>, transform_indices = @transform_2, window_bounds = array<i64: 1024, 32>}, {pipeline_mode = #tpu.pipeline_mode<synchronous>, transform_indices = @transform_3, window_bounds = array<i64: 1, 32>}, {transform_indices = @transform_4, window_bounds = array<i64: 2, 8, 32>}]} {
    %c0 = arith.constant 0 : index
    %c0_0 = arith.constant 0 : index
    %c0_1 = arith.constant 0 : index
    %0 = vector.load %arg2[%c0, %c0_0, %c0_1] : memref<3x8x1024xbf16, #tpu.memory_space<vmem>>, vector<1x8x1024xbf16>
    %1 = vector.shape_cast %0 : vector<1x8x1024xbf16> to vector<8x1024xbf16>
    %c1 = arith.constant 1 : index
    %c0_2 = arith.constant 0 : index
    %c0_3 = arith.constant 0 : index
    %2 = vector.load %arg2[%c1, %c0_2, %c0_3] : memref<3x8x1024xbf16, #tpu.memory_space<vmem>>, vector<1x8x1024xbf16>
    %3 = vector.shape_cast %2 : vector<1x8x1024xbf16> to vector<8x1024xbf16>
    %4 = arith.addf %1, %3 : vector<8x1024xbf16>
    %c2 = arith.constant 2 : index
    %c0_4 = arith.constant 0 : index
    %c0_5 = arith.constant 0 : index
    %5 = vector.load %arg2[%c2, %c0_4, %c0_5] : memref<3x8x1024xbf16, #tpu.memory_space<vmem>>, vector<1x8x1024xbf16>
    %6 = vector.shape_cast %5 : vector<1x8x1024xbf16> to vector<8x1024xbf16>
    %7 = arith.addf %4, %6 : vector<8x1024xbf16>
    %c0_6 = arith.constant 0 : index
    %c0_7 = arith.constant 0 : index
    %8 = vector.load %arg3[%c0_6, %c0_7] : memref<1024x32xbf16, #tpu.memory_space<vmem>>, vector<1024x32xbf16>
    %cst = arith.constant dense<0.000000e+00> : vector<8x32xf32>
    %9 = tpu.matmul %7, %8, %cst {dimension_numbers = #tpu.dot_dimension_numbers<[1], [0], [0], [1], [0, 0, 1, 1], [], []>} : vector<8x1024xbf16>, vector<1024x32xbf16>, vector<8x32xf32> -> vector<8x32xf32>
    %c0_8 = arith.constant 0 : index
    %c0_9 = arith.constant 0 : index
    %10 = vector.load %arg4[%c0_8, %c0_9] : memref<1x32xf32, #tpu.memory_space<vmem>>, vector<1x32xf32>
    %11 = vector.broadcast %10 : vector<1x32xf32> to vector<8x32xf32>
    %12 = arith.addf %9, %11 : vector<8x32xf32>
    %c0_10 = arith.constant 0 : index
    %c0_11 = arith.constant 0 : index
    %c0_12 = arith.constant 0 : index
    %13 = vector.load %arg1[%c0_10, %c0_11, %c0_12] : memref<2x8x32xf32, #tpu.memory_space<vmem>>, vector<2x8x32xf32>
    %14 = vector.shape_cast %12 : vector<8x32xf32> to vector<1x8x32xf32>
    %15 = vector.broadcast %14 : vector<1x8x32xf32> to vector<2x8x32xf32>
    %16 = arith.addf %13, %15 : vector<2x8x32xf32>
    %c0_13 = arith.constant 0 : index
    %c0_14 = arith.constant 0 : index
    %c0_15 = arith.constant 0 : index
    %17 = vector.load %arg5[%c0_13, %c0_14, %c0_15] : memref<2x8x32xf32, #tpu.memory_space<vmem>>, vector<2x8x32xf32>
    tpu.vector_store %arg5[%c0_13, %c0_14, %c0_15], %16 {strides = array<i32>} : memref<2x8x32xf32, #tpu.memory_space<vmem>>, vector<2x8x32xf32>,
    return
  }
  func.func @transform_0(%arg0: i32) -> (i32, i32, i32) {
    %c0_i32 = arith.constant 0 : i32
    %c0_i32_0 = arith.constant 0 : i32
    %c0_i32_1 = arith.constant 0 : i32
    return %c0_i32, %arg0, %c0_i32_0 : i32, i32, i32
  }
  func.func @transform_1(%arg0: i32) -> (i32, i32, i32) {
    %c0_i32 = arith.constant 0 : i32
    %c0_i32_0 = arith.constant 0 : i32
    %c0_i32_1 = arith.constant 0 : i32
    return %c0_i32, %arg0, %c0_i32_0 : i32, i32, i32
  }
  func.func @transform_2(%arg0: i32) -> (i32, i32) {
    %c0_i32 = arith.constant 0 : i32
    %c0_i32_0 = arith.constant 0 : i32
    %c0_i32_1 = arith.constant 0 : i32
    return %c0_i32, %c0_i32_0 : i32, i32
  }
  func.func @transform_3(%arg0: i32) -> (i32, i32) {
    %c0_i32 = arith.constant 0 : i32
    %c0_i32_0 = arith.constant 0 : i32
    %c0_i32_1 = arith.constant 0 : i32
    return %c0_i32, %c0_i32_0 : i32, i32
  }
  func.func @transform_4(%arg0: i32) -> (i32, i32, i32) {
    %c0_i32 = arith.constant 0 : i32
    %c0_i32_0 = arith.constant 0 : i32
    %c0_i32_1 = arith.constant 0 : i32
    return %c0_i32, %arg0, %c0_i32_0 : i32, i32, i32
  }
}

</mosaic_0001>

<llo_original>
// kernel: tpu_custom_call.1
$region0: #{tpu_custom_call.1}
  #allocation0 [shape = 'u32[]', space=smem, size = 0x4, offset = 0x4, fixed_abs, tag = 'smem constant byte address 0x4 - core index']
  #allocation1 [shape = 'u32[144,128]{1,0:T(1,128)}', space=vmem, size = 0x12000, scoped, tag = 'internal scratch']
  %s0 = inlined_call_operand.vmem [shape: f32[2,8,32], index: 0, kind: input, shape index: {}]
  %s1 = inlined_call_operand.vmem [shape: bf16[3,8,1024], index: 1, kind: input, shape index: {}]
  %s2 = inlined_call_operand.vmem [shape: bf16[1024,32], index: 2, kind: input, shape index: {}]
  %s3 = inlined_call_operand.vmem [shape: f32[1,32], index: 3, kind: input, shape index: {}]
  %s4 = inlined_call_operand.hbm [shape: f32[2,8,32], index: 4, kind: output, shape index: {}]
  %s5 = sld [smem:[#allocation0]]
  $region26: #{tpu_custom_call.1} parent=0
    _
  %s7 = ssub.s32 1, %s5
  %s8 = scalar_select 0, %s7, %s5
  $region1: #{tpu_custom_call.1} parent=0
    #allocation2 [shape = 'u8[8192]{0}', space=vmem, size = 0x2000, scoped, tag = 'output window, operand 0, single buffered']
    #allocation3 [shape = 's32[1]{0}', space=sflag, size = 0x4, scoped, tag = 'scoped memory for tpu_custom_call.1']
    %9 = vsyncpa [#allocation3], 0
    // Predicated region
    $region2: #{tpu_custom_call.1} parent=1 // pred_check
      _
    $region3: #{tpu_custom_call.1} parent=1 // pred_check_branch
      %11 = sbr.rel (0) target = $region5
    $region4: #{tpu_custom_call.1} parent=1 // pred_region
      _
    $region5: #{tpu_custom_call.1} parent=1 // pred_fallthru
      _
    // Predicated region
    $region6: #{tpu_custom_call.1} parent=1 // pred_check
      _
    $region7: #{tpu_custom_call.1} parent=1 // pred_check_branch
      %13 = sbr.rel (0) target = $region9
    $region8: #{tpu_custom_call.1} parent=1 // pred_region
      _
    $region9: #{tpu_custom_call.1} parent=1 // pred_fallthru
      _
    // Predicated region
    $region10: #{tpu_custom_call.1} parent=1 // pred_check
      _
    $region11: #{tpu_custom_call.1} parent=1 // pred_check_branch
      %15 = sbr.rel (0) target = $region13
    $region12: #{tpu_custom_call.1} parent=1 // pred_region
      _
    $region13: #{tpu_custom_call.1} parent=1 // pred_fallthru
      _
    // Predicated region
    $region14: #{tpu_custom_call.1} parent=1 // pred_check
      _
    $region15: #{tpu_custom_call.1} parent=1 // pred_check_branch
      %17 = sbr.rel (0) target = $region17
    $region16: #{tpu_custom_call.1} parent=1 // pred_region
      _
    $region17: #{tpu_custom_call.1} parent=1 // pred_fallthru
      _
    %v19 = vld [vmem:[%s1] sm:$0xff]
    %v20 = vld [vmem:[%s1 + $0x8] sm:$0xff]
    %v21 = vld [vmem:[%s1 + $0x10] sm:$0xff]
    %v22 = vld [vmem:[%s1 + $0x18] sm:$0xff]
    %s23 = scalar_lea.vmem %s1, 32
    %v24 = vld [vmem:[%s23] sm:$0xff]
    %v25 = vld [vmem:[%s23 + $0x8] sm:$0xff]
    %v26 = vld [vmem:[%s23 + $0x10] sm:$0xff]
    %v27 = vld [vmem:[%s23 + $0x18] sm:$0xff]
    %v28 = vadd.bf16 %v19, %v24
    %v29 = vadd.bf16 %v20, %v25
    %v30 = vadd.bf16 %v21, %v26
    %v31 = vadd.bf16 %v22, %v27
    %s32 = scalar_lea.vmem %s1, 64
    %v33 = vld [vmem:[%s32] sm:$0xff]
    %v34 = vld [vmem:[%s32 + $0x8] sm:$0xff]
    %v35 = vld [vmem:[%s32 + $0x10] sm:$0xff]
    %v36 = vld [vmem:[%s32 + $0x18] sm:$0xff]
    %v37 = vadd.bf16 %v28, %v33
    %v38 = vadd.bf16 %v29, %v34
    %v39 = vadd.bf16 %v30, %v35
    %v40 = vadd.bf16 %v31, %v36
    %v41 = vld [vmem:[%s2] sm:$0xf]
    %v42 = vld [vmem:[%s2 + $0x4] sm:$0xf]
    %v43 = vld [vmem:[%s2 + $0x8] sm:$0xf]
    %v44 = vld [vmem:[%s2 + $0xc] sm:$0xf]
    %v45 = vld [vmem:[%s2 + $0x10] sm:$0xf]
    %v46 = vld [vmem:[%s2 + $0x14] sm:$0xf]
    %v47 = vld [vmem:[%s2 + $0x18] sm:$0xf]
    %v48 = vld [vmem:[%s2 + $0x1c] sm:$0xf]
    %v49 = vld [vmem:[%s2 + $0x20] sm:$0xf]
    %v50 = vld [vmem:[%s2 + $0x24] sm:$0xf]
    %v51 = vld [vmem:[%s2 + $0x28] sm:$0xf]
    %v52 = vld [vmem:[%s2 + $0x2c] sm:$0xf]
    %v53 = vld [vmem:[%s2 + $0x30] sm:$0xf]
    %v54 = vld [vmem:[%s2 + $0x34] sm:$0xf]
    %v55 = vld [vmem:[%s2 + $0x38] sm:$0xf]
    %v56 = vld [vmem:[%s2 + $0x3c] sm:$0xf]
    %v57 = vld [vmem:[%s2 + $0x40] sm:$0xf]
    %v58 = vld [vmem:[%s2 + $0x44] sm:$0xf]
    %v59 = vld [vmem:[%s2 + $0x48] sm:$0xf]
    %v60 = vld [vmem:[%s2 + $0x4c] sm:$0xf]
    %v61 = vld [vmem:[%s2 + $0x50] sm:$0xf]
    %v62 = vld [vmem:[%s2 + $0x54] sm:$0xf]
    %v63 = vld [vmem:[%s2 + $0x58] sm:$0xf]
    %v64 = vld [vmem:[%s2 + $0x5c] sm:$0xf]
    %v65 = vld [vmem:[%s2 + $0x60] sm:$0xf]
    %v66 = vld [vmem:[%s2 + $0x64] sm:$0xf]
    %v67 = vld [vmem:[%s2 + $0x68] sm:$0xf]
    %v68 = vld [vmem:[%s2 + $0x6c] sm:$0xf]
    %v69 = vld [vmem:[%s2 + $0x70] sm:$0xf]
    %v70 = vld [vmem:[%s2 + $0x74] sm:$0xf]
    %v71 = vld [vmem:[%s2 + $0x78] sm:$0xf]
    %v72 = vld [vmem:[%s2 + $0x7c] sm:$0xf]
    %v73 = vld [vmem:[%s2 + $0x80] sm:$0xf]
    %v74 = vld [vmem:[%s2 + $0x84] sm:$0xf]
    %v75 = vld [vmem:[%s2 + $0x88] sm:$0xf]
    %v76 = vld [vmem:[%s2 + $0x8c] sm:$0xf]
    %v77 = vld [vmem:[%s2 + $0x90] sm:$0xf]
    %v78 = vld [vmem:[%s2 + $0x94] sm:$0xf]
    %v79 = vld [vmem:[%s2 + $0x98] sm:$0xf]
    %v80 = vld [vmem:[%s2 + $0x9c] sm:$0xf]
    %v81 = vld [vmem:[%s2 + $0xa0] sm:$0xf]
    %v82 = vld [vmem:[%s2 + $0xa4] sm:$0xf]
    %v83 = vld [vmem:[%s2 + $0xa8] sm:$0xf]
    %v84 = vld [vmem:[%s2 + $0xac] sm:$0xf]
    %v85 = vld [vmem:[%s2 + $0xb0] sm:$0xf]
    %v86 = vld [vmem:[%s2 + $0xb4] sm:$0xf]
    %v87 = vld [vmem:[%s2 + $0xb8] sm:$0xf]
    %v88 = vld [vmem:[%s2 + $0xbc] sm:$0xf]
    %v89 = vld [vmem:[%s2 + $0xc0] sm:$0xf]
    %v90 = vld [vmem:[%s2 + $0xc4] sm:$0xf]
    %v91 = vld [vmem:[%s2 + $0xc8] sm:$0xf]
    %v92 = vld [vmem:[%s2 + $0xcc] sm:$0xf]
    %v93 = vld [vmem:[%s2 + $0xd0] sm:$0xf]
    %v94 = vld [vmem:[%s2 + $0xd4] sm:$0xf]
    %v95 = vld [vmem:[%s2 + $0xd8] sm:$0xf]
    %v96 = vld [vmem:[%s2 + $0xdc] sm:$0xf]
    %v97 = vld [vmem:[%s2 + $0xe0] sm:$0xf]
    %v98 = vld [vmem:[%s2 + $0xe4] sm:$0xf]
    %v99 = vld [vmem:[%s2 + $0xe8] sm:$0xf]
    %v100 = vld [vmem:[%s2 + $0xec] sm:$0xf]
    %v101 = vld [vmem:[%s2 + $0xf0] sm:$0xf]
    %v102 = vld [vmem:[%s2 + $0xf4] sm:$0xf]
    %v103 = vld [vmem:[%s2 + $0xf8] sm:$0xf]
    %v104 = vld [vmem:[%s2 + $0xfc] sm:$0xf]
    %v105 = vld [vmem:[%s2 + $0x100] sm:$0xf]
    %v106 = vld [vmem:[%s2 + $0x104] sm:$0xf]
    %v107 = vld [vmem:[%s2 + $0x108] sm:$0xf]
    %v108 = vld [vmem:[%s2 + $0x10c] sm:$0xf]
    %v109 = vld [vmem:[%s2 + $0x110] sm:$0xf]
    %v110 = vld [vmem:[%s2 + $0x114] sm:$0xf]
    %v111 = vld [vmem:[%s2 + $0x118] sm:$0xf]
    %v112 = vld [vmem:[%s2 + $0x11c] sm:$0xf]
    %v113 = vld [vmem:[%s2 + $0x120] sm:$0xf]
    %v114 = vld [vmem:[%s2 + $0x124] sm:$0xf]
    %v115 = vld [vmem:[%s2 + $0x128] sm:$0xf]
    %v116 = vld [vmem:[%s2 + $0x12c] sm:$0xf]
    %v117 = vld [vmem:[%s2 + $0x130] sm:$0xf]
    %v118 = vld [vmem:[%s2 + $0x134] sm:$0xf]
    %v119 = vld [vmem:[%s2 + $0x138] sm:$0xf]
    %v120 = vld [vmem:[%s2 + $0x13c] sm:$0xf]
    %v121 = vld [vmem:[%s2 + $0x140] sm:$0xf]
    %v122 = vld [vmem:[%s2 + $0x144] sm:$0xf]
    %v123 = vld [vmem:[%s2 + $0x148] sm:$0xf]
    %v124 = vld [vmem:[%s2 + $0x14c] sm:$0xf]
    %v125 = vld [vmem:[%s2 + $0x150] sm:$0xf]
    %v126 = vld [vmem:[%s2 + $0x154] sm:$0xf]
    %v127 = vld [vmem:[%s2 + $0x158] sm:$0xf]
    %v128 = vld [vmem:[%s2 + $0x15c] sm:$0xf]
    %v129 = vld [vmem:[%s2 + $0x160] sm:$0xf]
    %v130 = vld [vmem:[%s2 + $0x164] sm:$0xf]
    %v131 = vld [vmem:[%s2 + $0x168] sm:$0xf]
    %v132 = vld [vmem:[%s2 + $0x16c] sm:$0xf]
    %v133 = vld [vmem:[%s2 + $0x170] sm:$0xf]
    %v134 = vld [vmem:[%s2 + $0x174] sm:$0xf]
    %v135 = vld [vmem:[%s2 + $0x178] sm:$0xf]
    %v136 = vld [vmem:[%s2 + $0x17c] sm:$0xf]
    %v137 = vld [vmem:[%s2 + $0x180] sm:$0xf]
    %v138 = vld [vmem:[%s2 + $0x184] sm:$0xf]
    %v139 = vld [vmem:[%s2 + $0x188] sm:$0xf]
    %v140 = vld [vmem:[%s2 + $0x18c] sm:$0xf]
    %v141 = vld [vmem:[%s2 + $0x190] sm:$0xf]
    %v142 = vld [vmem:[%s2 + $0x194] sm:$0xf]
    %v143 = vld [vmem:[%s2 + $0x198] sm:$0xf]
    %v144 = vld [vmem:[%s2 + $0x19c] sm:$0xf]
    %v145 = vld [vmem:[%s2 + $0x1a0] sm:$0xf]
    %v146 = vld [vmem:[%s2 + $0x1a4] sm:$0xf]
    %v147 = vld [vmem:[%s2 + $0x1a8] sm:$0xf]
    %v148 = vld [vmem:[%s2 + $0x1ac] sm:$0xf]
    %v149 = vld [vmem:[%s2 + $0x1b0] sm:$0xf]
    %v150 = vld [vmem:[%s2 + $0x1b4] sm:$0xf]
    %v151 = vld [vmem:[%s2 + $0x1b8] sm:$0xf]
    %v152 = vld [vmem:[%s2 + $0x1bc] sm:$0xf]
    %v153 = vld [vmem:[%s2 + $0x1c0] sm:$0xf]
    %v154 = vld [vmem:[%s2 + $0x1c4] sm:$0xf]
    %v155 = vld [vmem:[%s2 + $0x1c8] sm:$0xf]
    %v156 = vld [vmem:[%s2 + $0x1cc] sm:$0xf]
    %v157 = vld [vmem:[%s2 + $0x1d0] sm:$0xf]
    %v158 = vld [vmem:[%s2 + $0x1d4] sm:$0xf]
    %v159 = vld [vmem:[%s2 + $0x1d8] sm:$0xf]
    %v160 = vld [vmem:[%s2 + $0x1dc] sm:$0xf]
    %v161 = vld [vmem:[%s2 + $0x1e0] sm:$0xf]
    %v162 = vld [vmem:[%s2 + $0x1e4] sm:$0xf]
    %v163 = vld [vmem:[%s2 + $0x1e8] sm:$0xf]
    %v164 = vld [vmem:[%s2 + $0x1ec] sm:$0xf]
    %v165 = vld [vmem:[%s2 + $0x1f0] sm:$0xf]
    %v166 = vld [vmem:[%s2 + $0x1f4] sm:$0xf]
    %v167 = vld [vmem:[%s2 + $0x1f8] sm:$0xf]
    %v168 = vld [vmem:[%s2 + $0x1fc] sm:$0xf]
    %v169 = vld [vmem:[%s3] sm:$0x1]
    %v171 = vlaneseq
    %v172 = vshrl.u32 %v171, 7
    %v173 = vsub.s32 0, %v172
    %v174 = vrot.slane %v169, %v173
    %v180 = vunpack.c.l.b16 %v37
    %v181 = vunpack.c.h.b16 %v37
    %v182 = vunpack.c.l.b16 %v38
    %v183 = vunpack.c.h.b16 %v38
    %v184 = vunpack.c.l.b16 %v39
    %v185 = vunpack.c.h.b16 %v39
    %v186 = vunpack.c.l.b16 %v40
    %v187 = vunpack.c.h.b16 %v40
    %v188 = vpack.c.b16 %v180, %v180
    %v189 = vpack.c.b16 %v181, %v181
    %v190 = vpack.c.b16 %v182, %v182
    %v191 = vpack.c.b16 %v183, %v183
    %v192 = vpack.c.b16 %v184, %v184
    %v193 = vpack.c.b16 %v185, %v185
    %v194 = vpack.c.b16 %v186, %v186
    %v195 = vpack.c.b16 %v187, %v187
    %v332 = vunpack.c.l.b16 %v41
    %v333 = vunpack.c.l.b16 %v42
    %v334 = vunpack.c.l.b16 %v43
    %v335 = vunpack.c.l.b16 %v44
    %v336 = vunpack.c.l.b16 %v45
    %v337 = vunpack.c.l.b16 %v46
    %v338 = vunpack.c.l.b16 %v47
    %v339 = vunpack.c.l.b16 %v48
    %v340 = vunpack.c.l.b16 %v49
    %v341 = vunpack.c.l.b16 %v50
    %v342 = vunpack.c.l.b16 %v51
    %v343 = vunpack.c.l.b16 %v52
    %v344 = vunpack.c.l.b16 %v53
    %v345 = vunpack.c.l.b16 %v54
    %v346 = vunpack.c.l.b16 %v55
    %v347 = vunpack.c.l.b16 %v56
    %v348 = vunpack.c.l.b16 %v57
    %v349 = vunpack.c.l.b16 %v58
    %v350 = vunpack.c.l.b16 %v59
    %v351 = vunpack.c.l.b16 %v60
    %v352 = vunpack.c.l.b16 %v61
    %v353 = vunpack.c.l.b16 %v62
    %v354 = vunpack.c.l.b16 %v63
    %v355 = vunpack.c.l.b16 %v64
    %v356 = vunpack.c.l.b16 %v65
    %v357 = vunpack.c.l.b16 %v66
    %v358 = vunpack.c.l.b16 %v67
    %v359 = vunpack.c.l.b16 %v68
    %v360 = vunpack.c.l.b16 %v69
    %v361 = vunpack.c.l.b16 %v70
    %v362 = vunpack.c.l.b16 %v71
    %v363 = vunpack.c.l.b16 %v72
    %v364 = vunpack.c.l.b16 %v73
    %v365 = vunpack.c.l.b16 %v74
    %v366 = vunpack.c.l.b16 %v75
    %v367 = vunpack.c.l.b16 %v76
    %v368 = vunpack.c.l.b16 %v77
    %v369 = vunpack.c.l.b16 %v78
    %v370 = vunpack.c.l.b16 %v79
    %v371 = vunpack.c.l.b16 %v80
    %v372 = vunpack.c.l.b16 %v81
    %v373 = vunpack.c.l.b16 %v82
    %v374 = vunpack.c.l.b16 %v83
    %v375 = vunpack.c.l.b16 %v84
    %v376 = vunpack.c.l.b16 %v85
    %v377 = vunpack.c.l.b16 %v86
    %v378 = vunpack.c.l.b16 %v87
    %v379 = vunpack.c.l.b16 %v88
    %v380 = vunpack.c.l.b16 %v89
    %v381 = vunpack.c.l.b16 %v90
    %v382 = vunpack.c.l.b16 %v91
    %v383 = vunpack.c.l.b16 %v92
    %v384 = vunpack.c.l.b16 %v93
    %v385 = vunpack.c.l.b16 %v94
    %v386 = vunpack.c.l.b16 %v95
    %v387 = vunpack.c.l.b16 %v96
    %v388 = vunpack.c.l.b16 %v97
    %v389 = vunpack.c.l.b16 %v98
    %v390 = vunpack.c.l.b16 %v99
    %v391 = vunpack.c.l.b16 %v100
    %v392 = vunpack.c.l.b16 %v101
    %v393 = vunpack.c.l.b16 %v102
    %v394 = vunpack.c.l.b16 %v103
    %v395 = vunpack.c.l.b16 %v104
    %v396 = vunpack.c.l.b16 %v105
    %v397 = vunpack.c.l.b16 %v106
    %v398 = vunpack.c.l.b16 %v107
    %v399 = vunpack.c.l.b16 %v108
    %v400 = vunpack.c.l.b16 %v109
    %v401 = vunpack.c.l.b16 %v110
    %v402 = vunpack.c.l.b16 %v111
    %v403 = vunpack.c.l.b16 %v112
    %v404 = vunpack.c.l.b16 %v113
    %v405 = vunpack.c.l.b16 %v114
    %v406 = vunpack.c.l.b16 %v115
    %v407 = vunpack.c.l.b16 %v116
    %v408 = vunpack.c.l.b16 %v117
    %v409 = vunpack.c.l.b16 %v118
    %v410 = vunpack.c.l.b16 %v119
    %v411 = vunpack.c.l.b16 %v120
    %v412 = vunpack.c.l.b16 %v121
    %v413 = vunpack.c.l.b16 %v122
    %v414 = vunpack.c.l.b16 %v123
    %v415 = vunpack.c.l.b16 %v124
    %v416 = vunpack.c.l.b16 %v125
    %v417 = vunpack.c.l.b16 %v126
    %v418 = vunpack.c.l.b16 %v127
    %v419 = vunpack.c.l.b16 %v128
    %v420 = vunpack.c.l.b16 %v129
    %v421 = vunpack.c.l.b16 %v130
    %v422 = vunpack.c.l.b16 %v131
    %v423 = vunpack.c.l.b16 %v132
    %v424 = vunpack.c.l.b16 %v133
    %v425 = vunpack.c.l.b16 %v134
    %v426 = vunpack.c.l.b16 %v135
    %v427 = vunpack.c.l.b16 %v136
    %v428 = vunpack.c.l.b16 %v137
    %v429 = vunpack.c.l.b16 %v138
    %v430 = vunpack.c.l.b16 %v139
    %v431 = vunpack.c.l.b16 %v140
    %v432 = vunpack.c.l.b16 %v141
    %v433 = vunpack.c.l.b16 %v142
    %v434 = vunpack.c.l.b16 %v143
    %v435 = vunpack.c.l.b16 %v144
    %v436 = vunpack.c.l.b16 %v145
    %v437 = vunpack.c.l.b16 %v146
    %v438 = vunpack.c.l.b16 %v147
    %v439 = vunpack.c.l.b16 %v148
    %v440 = vunpack.c.l.b16 %v149
    %v441 = vunpack.c.l.b16 %v150
    %v442 = vunpack.c.l.b16 %v151
    %v443 = vunpack.c.l.b16 %v152
    %v444 = vunpack.c.l.b16 %v153
    %v445 = vunpack.c.l.b16 %v154
    %v446 = vunpack.c.l.b16 %v155
    %v447 = vunpack.c.l.b16 %v156
    %v448 = vunpack.c.l.b16 %v157
    %v449 = vunpack.c.l.b16 %v158
    %v450 = vunpack.c.l.b16 %v159
    %v451 = vunpack.c.l.b16 %v160
    %v452 = vunpack.c.l.b16 %v161
    %v453 = vunpack.c.l.b16 %v162
    %v454 = vunpack.c.l.b16 %v163
    %v455 = vunpack.c.l.b16 %v164
    %v456 = vunpack.c.l.b16 %v165
    %v457 = vunpack.c.l.b16 %v166
    %v458 = vunpack.c.l.b16 %v167
    %v459 = vunpack.c.l.b16 %v168
    %v460 = vpack.c.b16 %v333, %v332
    %v461 = vpack.c.b16 %v335, %v334
    %v462 = vpack.c.b16 %v337, %v336
    %v463 = vpack.c.b16 %v339, %v338
    %v464 = vpack.c.b16 %v341, %v340
    %v465 = vpack.c.b16 %v343, %v342
    %v466 = vpack.c.b16 %v345, %v344
    %v467 = vpack.c.b16 %v347, %v346
    %v468 = vpack.c.b16 %v349, %v348
    %v469 = vpack.c.b16 %v351, %v350
    %v470 = vpack.c.b16 %v353, %v352
    %v471 = vpack.c.b16 %v355, %v354
    %v472 = vpack.c.b16 %v357, %v356
    %v473 = vpack.c.b16 %v359, %v358
    %v474 = vpack.c.b16 %v361, %v360
    %v475 = vpack.c.b16 %v363, %v362
    %v476 = vpack.c.b16 %v365, %v364
    %v477 = vpack.c.b16 %v367, %v366
    %v478 = vpack.c.b16 %v369, %v368
    %v479 = vpack.c.b16 %v371, %v370
    %v480 = vpack.c.b16 %v373, %v372
    %v481 = vpack.c.b16 %v375, %v374
    %v482 = vpack.c.b16 %v377, %v376
    %v483 = vpack.c.b16 %v379, %v378
    %v484 = vpack.c.b16 %v381, %v380
    %v485 = vpack.c.b16 %v383, %v382
    %v486 = vpack.c.b16 %v385, %v384
    %v487 = vpack.c.b16 %v387, %v386
    %v488 = vpack.c.b16 %v389, %v388
    %v489 = vpack.c.b16 %v391, %v390
    %v490 = vpack.c.b16 %v393, %v392
    %v491 = vpack.c.b16 %v395, %v394
    %v492 = vpack.c.b16 %v397, %v396
    %v493 = vpack.c.b16 %v399, %v398
    %v494 = vpack.c.b16 %v401, %v400
    %v495 = vpack.c.b16 %v403, %v402
    %v496 = vpack.c.b16 %v405, %v404
    %v497 = vpack.c.b16 %v407, %v406
    %v498 = vpack.c.b16 %v409, %v408
    %v499 = vpack.c.b16 %v411, %v410
    %v500 = vpack.c.b16 %v413, %v412
    %v501 = vpack.c.b16 %v415, %v414
    %v502 = vpack.c.b16 %v417, %v416
    %v503 = vpack.c.b16 %v419, %v418
    %v504 = vpack.c.b16 %v421, %v420
    %v505 = vpack.c.b16 %v423, %v422
    %v506 = vpack.c.b16 %v425, %v424
    %v507 = vpack.c.b16 %v427, %v426
    %v508 = vpack.c.b16 %v429, %v428
    %v509 = vpack.c.b16 %v431, %v430
    %v510 = vpack.c.b16 %v433, %v432
    %v511 = vpack.c.b16 %v435, %v434
    %v512 = vpack.c.b16 %v437, %v436
    %v513 = vpack.c.b16 %v439, %v438
    %v514 = vpack.c.b16 %v441, %v440
    %v515 = vpack.c.b16 %v443, %v442
    %v516 = vpack.c.b16 %v445, %v444
    %v517 = vpack.c.b16 %v447, %v446
    %v518 = vpack.c.b16 %v449, %v448
    %v519 = vpack.c.b16 %v451, %v450
    %v520 = vpack.c.b16 %v453, %v452
    %v521 = vpack.c.b16 %v455, %v454
    %v522 = vpack.c.b16 %v457, %v456
    %v523 = vpack.c.b16 %v459, %v458
    %588 = vmatprep.subr.bf16.mxu0 0
    %589 = vmatpush1.bf16.msra.mxu0 %v467
    %590 = vmatprep.subr.bf16.mxu0 0
    %591 = vmatpush1.bf16.msra.mxu0 %v466
    %592 = vmatprep.subr.bf16.mxu0 0
    %593 = vmatpush1.bf16.msra.mxu0 %v465
    %594 = vmatprep.subr.bf16.mxu0 0
    %595 = vmatpush1.bf16.msra.mxu0 %v464
    %596 = vmatprep.subr.bf16.mxu0 0
    %597 = vmatpush1.bf16.msra.mxu0 %v463
    %598 = vmatprep.subr.bf16.mxu0 0
    %599 = vmatpush1.bf16.msra.mxu0 %v462
    %600 = vmatprep.subr.bf16.mxu0 0
    %601 = vmatpush1.bf16.msra.mxu0 %v461
    %602 = vmatprep.subr.bf16.mxu0 0
    %603 = vmatpush1.bf16.msra.mxu0 %v460
    %604 = vmatprep.subr.bf16.mxu0 0
    %605 = vmatpush2.bf16.msra.mxu0 %v475
    %606 = vmatprep.subr.bf16.mxu0 0
    %607 = vmatpush2.bf16.msra.mxu0 %v474
    %608 = vmatprep.subr.bf16.mxu0 0
    %609 = vmatpush2.bf16.msra.mxu0 %v473
    %610 = vmatprep.subr.bf16.mxu0 0
    %611 = vmatpush2.bf16.msra.mxu0 %v472
    %612 = vmatprep.subr.bf16.mxu0 0
    %613 = vmatpush2.bf16.msra.mxu0 %v471
    %614 = vmatprep.subr.bf16.mxu0 0
    %615 = vmatpush2.bf16.msra.mxu0 %v470
    %616 = vmatprep.subr.bf16.mxu0 0
    %617 = vmatpush2.bf16.msra.mxu0 %v469
    %618 = vmatprep.subr.bf16.mxu0 0
    %619 = vmatpush2.bf16.msra.mxu0 %v468
    %620 = vmatprep.mubr.bf16.mxu0 %v189
    %621 = vmatmul.mubr.bf16.gmra.mxu0 %v188
    %v622 = vpop.f32.mrf.mxu0
    %v623 = vadd.f32 %v174, %v622
    %v624 = vpop.f32.mrf.mxu0
    %v625 = vpop.f32.mrf.mxu0
    %v626 = vpop.f32.mrf.mxu0
    %627 = vdwg.mxu0
    %628 = vmatprep.subr.bf16.mxu0 0
    %629 = vmatpush1.bf16.msra.mxu0 %v483
    %630 = vmatprep.subr.bf16.mxu0 0
    %631 = vmatpush1.bf16.msra.mxu0 %v482
    %632 = vmatprep.subr.bf16.mxu0 0
    %633 = vmatpush1.bf16.msra.mxu0 %v481
    %634 = vmatprep.subr.bf16.mxu0 0
    %635 = vmatpush1.bf16.msra.mxu0 %v480
    %636 = vmatprep.subr.bf16.mxu0 0
    %637 = vmatpush1.bf16.msra.mxu0 %v479
    %638 = vmatprep.subr.bf16.mxu0 0
    %639 = vmatpush1.bf16.msra.mxu0 %v478
    %640 = vmatprep.subr.bf16.mxu0 0
    %641 = vmatpush1.bf16.msra.mxu0 %v477
    %642 = vmatprep.subr.bf16.mxu0 0
    %643 = vmatpush1.bf16.msra.mxu0 %v476
    %644 = vmatprep.subr.bf16.mxu0 0
    %645 = vmatpush2.bf16.msra.mxu0 %v491
    %646 = vmatprep.subr.bf16.mxu0 0
    %647 = vmatpush2.bf16.msra.mxu0 %v490
    %648 = vmatprep.subr.bf16.mxu0 0
    %649 = vmatpush2.bf16.msra.mxu0 %v489
    %650 = vmatprep.subr.bf16.mxu0 0
    %651 = vmatpush2.bf16.msra.mxu0 %v488
    %652 = vmatprep.subr.bf16.mxu0 0
    %653 = vmatpush2.bf16.msra.mxu0 %v487
    %654 = vmatprep.subr.bf16.mxu0 0
    %655 = vmatpush2.bf16.msra.mxu0 %v486
    %656 = vmatprep.subr.bf16.mxu0 0
    %657 = vmatpush2.bf16.msra.mxu0 %v485
    %658 = vmatprep.subr.bf16.mxu0 0
    %659 = vmatpush2.bf16.msra.mxu0 %v484
    %660 = vmatprep.mubr.bf16.mxu0 %v191
    %661 = vmatmul.mubr.bf16.gmra.mxu0 %v190
    %v662 = vpop.f32.mrf.mxu0
    %v663 = vadd.f32 %v623, %v662
    %v664 = vpop.f32.mrf.mxu0
    %v665 = vpop.f32.mrf.mxu0
    %v666 = vpop.f32.mrf.mxu0
    %667 = vdwg.mxu0
    %668 = vmatprep.subr.bf16.mxu0 0
    %669 = vmatpush1.bf16.msra.mxu0 %v499
    %670 = vmatprep.subr.bf16.mxu0 0
    %671 = vmatpush1.bf16.msra.mxu0 %v498
    %672 = vmatprep.subr.bf16.mxu0 0
    %673 = vmatpush1.bf16.msra.mxu0 %v497
    %674 = vmatprep.subr.bf16.mxu0 0
    %675 = vmatpush1.bf16.msra.mxu0 %v496
    %676 = vmatprep.subr.bf16.mxu0 0
    %677 = vmatpush1.bf16.msra.mxu0 %v495
    %678 = vmatprep.subr.bf16.mxu0 0
    %679 = vmatpush1.bf16.msra.mxu0 %v494
    %680 = vmatprep.subr.bf16.mxu0 0
    %681 = vmatpush1.bf16.msra.mxu0 %v493
    %682 = vmatprep.subr.bf16.mxu0 0
    %683 = vmatpush1.bf16.msra.mxu0 %v492
    %684 = vmatprep.subr.bf16.mxu0 0
    %685 = vmatpush2.bf16.msra.mxu0 %v507
    %686 = vmatprep.subr.bf16.mxu0 0
    %687 = vmatpush2.bf16.msra.mxu0 %v506
    %688 = vmatprep.subr.bf16.mxu0 0
    %689 = vmatpush2.bf16.msra.mxu0 %v505
    %690 = vmatprep.subr.bf16.mxu0 0
    %691 = vmatpush2.bf16.msra.mxu0 %v504
    %692 = vmatprep.subr.bf16.mxu0 0
    %693 = vmatpush2.bf16.msra.mxu0 %v503
    %694 = vmatprep.subr.bf16.mxu0 0
    %695 = vmatpush2.bf16.msra.mxu0 %v502
    %696 = vmatprep.subr.bf16.mxu0 0
    %697 = vmatpush2.bf16.msra.mxu0 %v501
    %698 = vmatprep.subr.bf16.mxu0 0
    %699 = vmatpush2.bf16.msra.mxu0 %v500
    %700 = vmatprep.mubr.bf16.mxu0 %v193
    %701 = vmatmul.mubr.bf16.gmra.mxu0 %v192
    %v702 = vpop.f32.mrf.mxu0
    %v703 = vadd.f32 %v663, %v702
    %v704 = vpop.f32.mrf.mxu0
    %v705 = vpop.f32.mrf.mxu0
    %v706 = vpop.f32.mrf.mxu0
    %707 = vdwg.mxu0
    %708 = vmatprep.subr.bf16.mxu0 0
    %709 = vmatpush1.bf16.msra.mxu0 %v515
    %710 = vmatprep.subr.bf16.mxu0 0
    %711 = vmatpush1.bf16.msra.mxu0 %v514
    %712 = vmatprep.subr.bf16.mxu0 0
    %713 = vmatpush1.bf16.msra.mxu0 %v513
    %714 = vmatprep.subr.bf16.mxu0 0
    %715 = vmatpush1.bf16.msra.mxu0 %v512
    %716 = vmatprep.subr.bf16.mxu0 0
    %717 = vmatpush1.bf16.msra.mxu0 %v511
    %718 = vmatprep.subr.bf16.mxu0 0
    %719 = vmatpush1.bf16.msra.mxu0 %v510
    %720 = vmatprep.subr.bf16.mxu0 0
    %721 = vmatpush1.bf16.msra.mxu0 %v509
    %722 = vmatprep.subr.bf16.mxu0 0
    %723 = vmatpush1.bf16.msra.mxu0 %v508
    %724 = vmatprep.subr.bf16.mxu0 0
    %725 = vmatpush2.bf16.msra.mxu0 %v523
    %726 = vmatprep.subr.bf16.mxu0 0
    %727 = vmatpush2.bf16.msra.mxu0 %v522
    %728 = vmatprep.subr.bf16.mxu0 0
    %729 = vmatpush2.bf16.msra.mxu0 %v521
    %730 = vmatprep.subr.bf16.mxu0 0
    %731 = vmatpush2.bf16.msra.mxu0 %v520
    %732 = vmatprep.subr.bf16.mxu0 0
    %733 = vmatpush2.bf16.msra.mxu0 %v519
    %734 = vmatprep.subr.bf16.mxu0 0
    %735 = vmatpush2.bf16.msra.mxu0 %v518
    %736 = vmatprep.subr.bf16.mxu0 0
    %737 = vmatpush2.bf16.msra.mxu0 %v517
    %738 = vmatprep.subr.bf16.mxu0 0
    %739 = vmatpush2.bf16.msra.mxu0 %v516
    %740 = vmatprep.mubr.bf16.mxu0 %v195
    %741 = vmatmul.mubr.bf16.gmra.mxu0 %v194
    %v742 = vpop.f32.mrf.mxu0
    %v743 = vadd.f32 %v703, %v742
    %v744 = vpop.f32.mrf.mxu0
    %v745 = vpop.f32.mrf.mxu0
    %v746 = vpop.f32.mrf.mxu0
    %747 = vdwg.mxu0
    %v748 = vld [vmem:[%s0] sm:$0xff]
    %v749 = vld [vmem:[%s0 + $0x8] sm:$0xff]
    %v750 = vadd.f32 %v748, %v743
    %v751 = vadd.f32 %v749, %v743
    %vm752 = vcmask 261120
    %753 = vst.msk [vmem:[#allocation2] sm:$0xff] %vm752, %v750
    %754 = vst.msk [vmem:[#allocation2 + $0x8] sm:$0xff] %vm752, %v751
    // Predicated region
    $region18: #{tpu_custom_call.1} parent=1 // pred_check
      _
    $region19: #{tpu_custom_call.1} parent=1 // pred_check_branch
      %756 = sbr.rel (0) target = $region21
    $region20: #{tpu_custom_call.1} parent=1 // pred_region
      %s758 = ssub.s32 256, 256
      %759 = vsyncadd [#allocation3], %s758
      %s760 = sshll.u32 [#allocation2], 4
      %s761 = int_to_ptr.vmem [resolvable:$true] %s760
      %766 = dma.vmem_to_hbm [thread:$0]  %s761, 256, %s4, [#allocation3], 128, 128, 8
    $region21: #{tpu_custom_call.1} parent=1 // pred_fallthru
      _
    // Predicated region
    $region22: #{tpu_custom_call.1} parent=1 // pred_check
      _
    $region23: #{tpu_custom_call.1} parent=1 // pred_check_branch
      %768 = sbr.rel (0) target = $region25
    $region24: #{tpu_custom_call.1} parent=1 // pred_region
      %769 = dma.done [#allocation3], 256
    $region25: #{tpu_custom_call.1} parent=1 // pred_fallthru
      _
    %770 = vsyncpa [#allocation3], 1

</llo_original>
